<compile_context>
chip_gen: v7x
topology: tpu7x:2x2x1
jax: 0.10.0
libtpu: 0.0.40
codegen_flags: <defaults>
</compile_context>

<pallas_src>
import functools

import jax
import jax.numpy as jnp
from jax import lax
from jax.experimental import pallas as pl
from jax.experimental.pallas import tpu as pltpu


# ----------------------------------------------------------------------------
# Kernels
# ----------------------------------------------------------------------------
def _mid_kernel(x_ref, aff_ref, w_ref, h_ref, stats_ref, acc_ref, *, has_affine):
    """One MLP layer: (optional BN-affine + ReLU on the streamed pre-BN input), 1x1-conv matmul,
    bf16 writeback of the new pre-BN activation, and per-channel sum / sum-of-squares accumulation
    for the *next* BatchNorm."""
    t = pl.program_id(0)

    @pl.when(t == 0)
    def _():
        acc_ref[...] = jnp.zeros_like(acc_ref)

    xp = x_ref[...]                                            # bf16 [tile_m, c_in]
    if has_affine:
        # previous layer's finalized BN: y = h * scale + shift, then ReLU (f32 math).
        a = jnp.maximum(xp.astype(jnp.float32) * aff_ref[0:1, :] + aff_ref[1:2, :], 0.0)
        a = a.astype(jnp.bfloat16)
    else:
        a = xp                                                 # layer 0: feed bf16 input directly

    hv = jnp.dot(a, w_ref[...], preferred_element_type=jnp.float32)   # MXU, f32 accumulation
    h_ref[...] = hv.astype(jnp.bfloat16)

    acc_ref[...] += jnp.concatenate(
        [jnp.sum(hv, axis=0, keepdims=True),
         jnp.sum(hv * hv, axis=0, keepdims=True)], axis=0)

    @pl.when(t == pl.num_programs(0) - 1)
    def _():
        stats_ref[...] = acc_ref[...]


def _final_kernel(h_ref, aff_ref, o_ref, *, k, g, c):
    """Last layer BN-affine + ReLU, max over the K neighbors, lane-dense packed store."""
    a = jnp.maximum(h_ref[...].astype(jnp.float32) * aff_ref[0:1, :] + aff_ref[1:2, :], 0.0)
    ts = a.shape[0] // k
    pooled = jnp.max(a.reshape(ts, k, c), axis=1)              # torch.max(grouped_points, 2)[0]
    o_ref[...] = pooled.reshape(ts // g, g * c)                 # pack g query points per 128-lane row


# ----------------------------------------------------------------------------
# Tiling / VMEM helpers (padded footprints)
# ----------------------------------------------------------------------------
def _round_up(v, m):
    return -(-v // m) * m


def _pick_tile_points(bs, k, c_in_max, c_out_max, g, target_block_bytes, vmem_cap_bytes):
    """Largest divisor ts of bs (g-aligned, (8,128)-legal) whose padded double-buffered streaming
    blocks stay under target_block_bytes; else the smallest legal divisor under the VMEM cap."""
    lanes_in = _round_up(max(c_in_max, 1), 128)
    lanes_out = _round_up(max(c_out_max, 1), 128)

    def stream_bytes(ts):
        rows = _round_up(ts * k, 16)                           # bf16 sublane packing
        return 2 * rows * (lanes_in + lanes_out) * 2           # double-buffered in + out, bf16

    cands = []
    for ts in range(1, bs + 1):
        if bs % ts:
            continue
        if ts % g:
            continue
        if (ts * k) % 8 and ts != bs:                          # streamed block sublane legality
            continue
        if (ts // g) % 8 and ts != bs:                         # packed-output sublane legality
            continue
        cands.append(ts)
    if not cands:
        return None                                            # caller retries with g = 1
    fitting = [ts for ts in cands if stream_bytes(ts) <= target_block_bytes]
    if fitting:
        return max(fitting)
    under_cap = [ts for ts in cands if stream_bytes(ts) <= vmem_cap_bytes]
    # TODO(synk): pad BS with stat-masked rows if even the smallest divisor blows the cap.
    return min(under_cap) if under_cap else min(cands)


def _vmem_limit_bytes(blocks):
    """blocks: (rows, cols, bytes_per_elem, n_buffers); padded to (16|8, 128) VMEM tiles."""
    total = 0
    for rows, cols, b, nb in blocks:
        sub = 16 if b == 2 else 8
        total += nb * _round_up(max(rows, 1), sub) * _round_up(max(cols, 1), 128) * b
    return int(min(max(2 * total, 8 * 2 ** 20), 48 * 2 ** 20))


# ----------------------------------------------------------------------------
# Fused MLP chain (multi-call: stats -> ... -> apply + K-max)
# ----------------------------------------------------------------------------
def _bn_affine(stats, gamma, beta, m_total, eps):
    mean = stats[0] / m_total
    var = jnp.maximum(stats[1] / m_total - mean * mean, 0.0)   # biased variance, clamped
    scale = gamma * lax.rsqrt(var + eps)
    shift = beta - mean * scale
    return jnp.stack([scale, shift], axis=0)                   # (2, C)


def msg_mlp_pallas(grouped, layer_params, *, eps=1e-5, target_block_bytes=4 * 2 ** 20):
    """grouped: [B, S, K, C0] (f32 or bf16); layer_params: list of (w[Cin,Cout], gamma, beta)."""
    B, S, K, C0 = grouped.shape
    BS, M = B * S, B * S * K
    widths = [w.shape[1] for (w, _, _) in layer_params]
    c_last = widths[-1]

    # Lane-dense output packing factor.
    g = 128 // c_last if (c_last < 128 and 128 % c_last == 0 and BS % (128 // c_last) == 0) else 1

    c_in_max = max([C0] + widths[:-1])
    c_out_max = max(widths)
    ts = _pick_tile_points(BS, K, c_in_max, c_out_max, g, target_block_bytes, 40 * 2 ** 20)
    if ts is None:
        g = 1
        ts = _pick_tile_points(BS, K, c_in_max, c_out_max, g, target_block_bytes, 40 * 2 ** 20)
    tile_m = ts * K
    n_tiles = BS // ts

    x = grouped.reshape(M, C0)
    if x.dtype != jnp.bfloat16:
        x = x.astype(jnp.bfloat16)

    h = x
    affine = jnp.zeros((2, C0), jnp.float32)                   # dummy for layer 0 (unused)
    for l, (w, gamma, beta) in enumerate(layer_params):
        c_in = h.shape[1]
        c_out = widths[l]
        w_bf = w.astype(jnp.bfloat16)
        kernel = functools.partial(_mid_kernel, has_affine=(l > 0))
        vmem = _vmem_limit_bytes([(tile_m, c_in, 2, 2), (tile_m, c_out, 2, 2),
                                  (c_in, c_out, 2, 1), (2, c_in, 4, 1), (2, c_out, 4, 2)])
        h, stats = pl.pallas_call(
            kernel,
            out_shape=(jax.ShapeDtypeStruct((M, c_out), jnp.bfloat16),
                       jax.ShapeDtypeStruct((2, c_out), jnp.float32)),
            grid_spec=pltpu.PrefetchScalarGridSpec(
                num_scalar_prefetch=0,
                grid=(n_tiles,),
                in_specs=[pl.BlockSpec((tile_m, c_in), lambda t: (t, 0)),
                          pl.BlockSpec((2, c_in), lambda t: (0, 0)),
                          pl.BlockSpec((c_in, c_out), lambda t: (0, 0))],
                out_specs=[pl.BlockSpec((tile_m, c_out), lambda t: (t, 0)),
                           pl.BlockSpec((2, c_out), lambda t: (0, 0))],
                scratch_shapes=[pltpu.VMEM((2, c_out), jnp.float32)],
            ),
            compiler_params=pltpu.CompilerParams(
                dimension_semantics=("arbitrary",),            # stats accumulate across tiles
                vmem_limit_bytes=vmem),
        )(h, affine, w_bf)
        affine = _bn_affine(stats, gamma, beta, float(M), eps)

    # Final call: BN affine + ReLU on h_{L-1}, max over K neighbors, lane-dense packed f32 output.
    kernel = functools.partial(_final_kernel, k=K, g=g, c=c_last)
    vmem = _vmem_limit_bytes([(tile_m, c_last, 2, 2), (2, c_last, 4, 1),
                              (ts // g, g * c_last, 4, 2)])
    out = pl.pallas_call(
        kernel,
        out_shape=jax.ShapeDtypeStruct((BS // g, g * c_last), jnp.float32),
        grid_spec=pltpu.PrefetchScalarGridSpec(
            num_scalar_prefetch=0,
            grid=(n_tiles,),
            in_specs=[pl.BlockSpec((tile_m, c_last), lambda t: (t, 0)),
                      pl.BlockSpec((2, c_last), lambda t: (0, 0))],
            out_specs=pl.BlockSpec((ts // g, g * c_last), lambda t: (t, 0)),
        ),
        compiler_params=pltpu.CompilerParams(
            dimension_semantics=("parallel",),                 # no cross-tile state -> megacore OK
            vmem_limit_bytes=vmem),
    )(h, affine)
    return out.reshape(B, S, c_last)                           # row-major unpack of the g-fold


def _msg_mlp_ref(grouped, layer_params, eps=1e-5):
    """Pure-JAX reference mirroring the kernel numerics (bf16 matmul inputs & intermediates,
    f32 BN statistics / affine math)."""
    B, S, K, C0 = grouped.shape
    M = B * S * K
    x = grouped.reshape(M, C0).astype(jnp.bfloat16)
    a = None
    for (w, gamma, beta) in layer_params:
        h = jnp.dot(x, w.astype(jnp.bfloat16), preferred_element_type=jnp.float32)
        mean = jnp.mean(h, axis=0)
        var = jnp.maximum(jnp.mean(h * h, axis=0) - mean * mean, 0.0)
        scale = gamma * lax.rsqrt(var + eps)
        shift = beta - mean * scale
        h_q = h.astype(jnp.bfloat16).astype(jnp.float32)        # mirrors the bf16 HBM intermediate
        a = jnp.maximum(h_q * scale[None, :] + shift[None, :], 0.0)
        x = a.astype(jnp.bfloat16)
    return jnp.max(a.reshape(B * S, K, -1), axis=1).reshape(B, S, -1)


# ----------------------------------------------------------------------------
# Plain-JAX glue (sequential / sort-based selection -- matches the torch reference)
# ----------------------------------------------------------------------------
def index_points(points, idx):
    return jax.vmap(lambda p, i: p[i])(points, idx)


def square_distance(src, dst):
    d = -2.0 * jnp.matmul(src, jnp.swapaxes(dst, 1, 2))
    d = d + jnp.sum(src ** 2, -1)[:, :, None]
    d = d + jnp.sum(dst ** 2, -1)[:, None, :]
    return d


def farthest_point_sample(xyz, npoint):
    # deterministic start at index 0 (torch.randint(...) * 0)
    B, N, _ = xyz.shape

    def body(i, state):
        distance, farthest, centroids = state
        centroids = centroids.at[:, i].set(farthest)
        centroid = jax.vmap(lambda p, f: p[f])(xyz, farthest)[:, None, :]
        dist = jnp.sum((xyz - centroid) ** 2, -1)
        distance = jnp.minimum(distance, dist)
        farthest = jnp.argmax(distance, axis=-1).astype(jnp.int32)
        return distance, farthest, centroids

    distance = jnp.full((B, N), 1e10, jnp.float32)
    farthest = jnp.zeros((B,), jnp.int32)
    centroids = jnp.zeros((B, npoint), jnp.int32)
    _, _, centroids = lax.fori_loop(0, npoint, body, (distance, farthest, centroids))
    return centroids


def query_ball_point(radius, nsample, xyz, new_xyz):
    B, N, _ = xyz.shape
    S = new_xyz.shape[1]
    sqrdists = square_distance(new_xyz, xyz)
    group_idx = jnp.broadcast_to(jnp.arange(N, dtype=jnp.int32), (B, S, N))
    group_idx = jnp.where(sqrdists > radius ** 2, N, group_idx)
    group_idx = jnp.sort(group_idx, axis=-1)[:, :, :nsample]
    group_first = jnp.broadcast_to(group_idx[:, :, :1], (B, S, nsample))
    group_idx = jnp.where(group_idx == N, group_first, group_idx)
    return group_idx


# ----------------------------------------------------------------------------
# Module
# ----------------------------------------------------------------------------
class PointNetSetAbstractionMsgPallas:
    def __init__(self, npoint, radius_list, nsample_list, in_channel, mlp_list, key):
        self.npoint = npoint
        self.radius_list = radius_list
        self.nsample_list = nsample_list
        # Synthetic params; per layer: conv W [Cin,Cout], BN gamma/beta [Cout].
        # Conv2d bias omitted on purpose: BatchNorm's mean subtraction cancels it exactly.
        self.params = []
        for mlp in mlp_list:
            last = in_channel + 3
            layers = []
            for out_c in mlp:
                key, k1, k2, k3 = jax.random.split(key, 4)
                w = 0.2 * jax.random.normal(k1, (last, out_c), jnp.float32)
                gamma = 1.0 + 0.1 * jax.random.normal(k2, (out_c,), jnp.float32)
                beta = 0.1 * jax.random.normal(k3, (out_c,), jnp.float32)
                layers.append((w, gamma, beta))
                last = out_c
            self.params.append(layers)

    def __call__(self, xyz, points):
        # xyz: [B, 3, N], points: [B, D, N]  (PyTorch channel-first inputs)
        xyz = jnp.transpose(xyz, (0, 2, 1))
        if points is not None:
            points = jnp.transpose(points, (0, 2, 1))
        B, N, C = xyz.shape
        S = self.npoint
        new_xyz = index_points(xyz, farthest_point_sample(xyz, S))          # [B, S, 3]

        new_points_list = []
        for i, radius in enumerate(self.radius_list):
            K = self.nsample_list[i]
            group_idx = query_ball_point(radius, K, xyz, new_xyz)           # [B,S,K]
            grouped_xyz = index_points(xyz, group_idx) - new_xyz[:, :, None, :]
            # Produce grouped_points directly in bf16 so no separate f32->bf16 convert pass
            # of the K-times-larger slab is needed before the kernel streams it.
            if points is not None:
                grouped_points = jnp.concatenate(
                    [index_points(points, group_idx).astype(jnp.bfloat16),
                     grouped_xyz.astype(jnp.bfloat16)], axis=-1)            # [B,S,K,D+3]
            else:
                grouped_points = grouped_xyz.astype(jnp.bfloat16)
            feat = msg_mlp_pallas(grouped_points, self.params[i])           # [B,S,Cout] f32
            new_points_list.append(jnp.transpose(feat, (0, 2, 1)))          # [B,Cout,S]

        new_xyz_out = jnp.transpose(new_xyz, (0, 2, 1))                     # [B,3,S]
        new_points_concat = jnp.concatenate(new_points_list, axis=1)        # [B,sum Cout,S]
        return new_xyz_out, new_points_concat


if __name__ == "__main__":
    key = jax.random.PRNGKey(0)
    k_xyz, k_pts, k_grp, k_grp2, k_param = jax.random.split(key, 5)

    B, N, D = 2, 32, 4          # batch, points, feature channels (in_channel)
    S_np = 8                    # npoint
    xyz = jax.random.uniform(k_xyz, (B, 3, N), jnp.float32, minval=-1.0, maxval=1.0)
    points = jax.random.normal(k_pts, (B, D, N), jnp.float32)

    module = PointNetSetAbstractionMsgPallas(
        npoint=S_np,
        radius_list=[0.4, 0.8],
        nsample_list=[8, 16],
        in_channel=D,
        mlp_list=[[16, 16, 32], [16, 16, 32]],
        key=k_param,
    )

    # Sanity check 1: single-tile path vs pure-JAX reference.
    grouped_chk = jax.random.normal(k_grp, (B, S_np, 8, D + 3), jnp.float32)
    got = msg_mlp_pallas(grouped_chk, module.params[0])
    want = _msg_mlp_ref(grouped_chk, module.params[0])
    assert jnp.allclose(got, want, atol=1e-2, rtol=1e-2), "Pallas kernel mismatch (single tile)"

    # Sanity check 2: force multiple tiles (small block budget) to exercise the cross-tile BN
    # statistics accumulation and the pipelined bf16 intermediate writeback/readback.
    grouped_chk2 = jax.random.normal(k_grp2, (2, 32, 16, D + 3), jnp.float32)
    got2 = msg_mlp_pallas(grouped_chk2, module.params[1], target_block_bytes=64 * 1024)
    want2 = _msg_mlp_ref(grouped_chk2, module.params[1])
    assert jnp.allclose(got2, want2, atol=1e-2, rtol=1e-2), "Pallas kernel mismatch (multi tile)"

    fwd = jax.jit(lambda a, b: module(a, b))
    new_xyz, new_points = jax.block_until_ready(fwd(xyz, points))

    assert new_xyz.shape == (B, 3, S_np)
    assert new_points.shape == (B, 32 + 32, S_np)
    assert new_points.dtype == jnp.float32
    print("KERNEL_OK")
</pallas_src>

<mosaic_0001>
module attributes {stable_mosaic.version = 11 : i64} {
  func.func @_mid_kernel(%arg0: i32, %arg1: memref<128x7xbf16, #tpu.memory_space<vmem>>, %arg2: memref<2x7xf32, #tpu.memory_space<vmem>>, %arg3: memref<7x16xbf16, #tpu.memory_space<vmem>>, %arg4: memref<128x16xbf16, #tpu.memory_space<vmem>>, %arg5: memref<2x16xf32, #tpu.memory_space<vmem>>, %arg6: memref<2x16xf32, #tpu.memory_space<vmem>>) attributes {dimension_semantics = [#tpu.dimension_semantics<arbitrary>], iteration_bounds = array<i64: 1>, scalar_prefetch = 0 : i64, scratch_operands = 1 : i64, tpu.core_type = #tpu.core_type<tc>, window_params = [{transform_indices = @transform_0, window_bounds = array<i64: 128, 7>}, {pipeline_mode = #tpu.pipeline_mode<synchronous>, transform_indices = @transform_1, window_bounds = array<i64: 2, 7>}, {pipeline_mode = #tpu.pipeline_mode<synchronous>, transform_indices = @transform_2, window_bounds = array<i64: 7, 16>}, {transform_indices = @transform_3, window_bounds = array<i64: 128, 16>}, {pipeline_mode = #tpu.pipeline_mode<synchronous>, transform_indices = @transform_4, window_bounds = array<i64: 2, 16>}]} {
    %c0_i32 = arith.constant 0 : i32
    %0 = arith.cmpi eq, %arg0, %c0_i32 : i32
    %1 = arith.extui %0 : i1 to i32
    %c0_i32_0 = arith.constant 0 : i32
    %2 = arith.cmpi ne, %1, %c0_i32_0 : i32
    scf.if %2 {
      %cst_14 = arith.constant 0.000000e+00 : f32
      %20 = vector.broadcast %cst_14 : f32 to vector<2x16xf32>
      %c0_15 = arith.constant 0 : index
      %c0_16 = arith.constant 0 : index
      %21 = vector.load %arg6[%c0_15, %c0_16] : memref<2x16xf32, #tpu.memory_space<vmem>>, vector<2x16xf32>
      tpu.vector_store %arg6[%c0_15, %c0_16], %20 {strides = array<i32>} : memref<2x16xf32, #tpu.memory_space<vmem>>, vector<2x16xf32>,
    } else {
    }
    %c0 = arith.constant 0 : index
    %c0_1 = arith.constant 0 : index
    %3 = vector.load %arg1[%c0, %c0_1] : memref<128x7xbf16, #tpu.memory_space<vmem>>, vector<128x7xbf16>
    %c0_2 = arith.constant 0 : index
    %c0_3 = arith.constant 0 : index
    %4 = vector.load %arg3[%c0_2, %c0_3] : memref<7x16xbf16, #tpu.memory_space<vmem>>, vector<7x16xbf16>
    %cst = arith.constant dense<0.000000e+00> : vector<128x16xf32>
    %5 = tpu.matmul %3, %4, %cst {dimension_numbers = #tpu.dot_dimension_numbers<[1], [0], [0], [1], [0, 0, 1, 1], [], []>} : vector<128x7xbf16>, vector<7x16xbf16>, vector<128x16xf32> -> vector<128x16xf32>
    %6 = arith.truncf %5 : vector<128x16xf32> to vector<128x16xbf16>
    %c0_4 = arith.constant 0 : index
    %c0_5 = arith.constant 0 : index
    %7 = vector.load %arg4[%c0_4, %c0_5] : memref<128x16xbf16, #tpu.memory_space<vmem>>, vector<128x16xbf16>
    tpu.vector_store %arg4[%c0_4, %c0_5], %6 {strides = array<i32>} : memref<128x16xbf16, #tpu.memory_space<vmem>>, vector<128x16xbf16>,
    %c0_6 = arith.constant 0 : index
    %c0_7 = arith.constant 0 : index
    %8 = vector.load %arg6[%c0_6, %c0_7] : memref<2x16xf32, #tpu.memory_space<vmem>>, vector<2x16xf32>
    %cst_8 = arith.constant dense<0.000000e+00> : vector<16xf32>
    %9 = vector.multi_reduction <add>, %5, %cst_8 [0] : vector<128x16xf32> to vector<16xf32>
    %10 = vector.shape_cast %9 : vector<16xf32> to vector<1x16xf32>
    %11 = arith.mulf %5, %5 : vector<128x16xf32>
    %cst_9 = arith.constant dense<0.000000e+00> : vector<16xf32>
    %12 = vector.multi_reduction <add>, %11, %cst_9 [0] : vector<128x16xf32> to vector<16xf32>
    %13 = vector.shape_cast %12 : vector<16xf32> to vector<1x16xf32>
    %14 = tpu.concatenate %10, %13 in 0 : vector<1x16xf32>, vector<1x16xf32> -> vector<2x16xf32>
    %15 = arith.addf %8, %14 : vector<2x16xf32>
    %c0_10 = arith.constant 0 : index
    %c0_11 = arith.constant 0 : index
    %16 = vector.load %arg6[%c0_10, %c0_11] : memref<2x16xf32, #tpu.memory_space<vmem>>, vector<2x16xf32>
    tpu.vector_store %arg6[%c0_10, %c0_11], %15 {strides = array<i32>} : memref<2x16xf32, #tpu.memory_space<vmem>>, vector<2x16xf32>,
    %c0_i32_12 = arith.constant 0 : i32
    %17 = arith.cmpi eq, %arg0, %c0_i32_12 : i32
    %18 = arith.extui %17 : i1 to i32
    %c0_i32_13 = arith.constant 0 : i32
    %19 = arith.cmpi ne, %18, %c0_i32_13 : i32
    scf.if %19 {
      %c0_14 = arith.constant 0 : index
      %c0_15 = arith.constant 0 : index
      %20 = vector.load %arg6[%c0_14, %c0_15] : memref<2x16xf32, #tpu.memory_space<vmem>>, vector<2x16xf32>
      %c0_16 = arith.constant 0 : index
      %c0_17 = arith.constant 0 : index
      %21 = vector.load %arg5[%c0_16, %c0_17] : memref<2x16xf32, #tpu.memory_space<vmem>>, vector<2x16xf32>
      tpu.vector_store %arg5[%c0_16, %c0_17], %20 {strides = array<i32>} : memref<2x16xf32, #tpu.memory_space<vmem>>, vector<2x16xf32>,
    } else {
    }
    return
  }
  func.func @transform_0(%arg0: i32) -> (i32, i32) {
    %c0_i32 = arith.constant 0 : i32
    %c0_i32_0 = arith.constant 0 : i32
    return %arg0, %c0_i32 : i32, i32
  }
  func.func @transform_1(%arg0: i32) -> (i32, i32) {
    %c0_i32 = arith.constant 0 : i32
    %c0_i32_0 = arith.constant 0 : i32
    %c0_i32_1 = arith.constant 0 : i32
    return %c0_i32, %c0_i32_0 : i32, i32
  }
  func.func @transform_2(%arg0: i32) -> (i32, i32) {
    %c0_i32 = arith.constant 0 : i32
    %c0_i32_0 = arith.constant 0 : i32
    %c0_i32_1 = arith.constant 0 : i32
    return %c0_i32, %c0_i32_0 : i32, i32
  }
  func.func @transform_3(%arg0: i32) -> (i32, i32) {
    %c0_i32 = arith.constant 0 : i32
    %c0_i32_0 = arith.constant 0 : i32
    return %arg0, %c0_i32 : i32, i32
  }
  func.func @transform_4(%arg0: i32) -> (i32, i32) {
    %c0_i32 = arith.constant 0 : i32
    %c0_i32_0 = arith.constant 0 : i32
    %c0_i32_1 = arith.constant 0 : i32
    return %c0_i32, %c0_i32_0 : i32, i32
  }
}

</mosaic_0001>

<llo_original>
// kernel: tpu_custom_call.1
$region0: #{tpu_custom_call.1}
  #allocation0 [shape = 'u32[]', space=smem, size = 0x4, offset = 0x4, fixed_abs, tag = 'smem constant byte address 0x4 - core index']
  #allocation1 [shape = 'u32[144,128]{1,0:T(1,128)}', space=vmem, size = 0x12000, scoped, tag = 'internal scratch']
  #allocation2 [shape = 'f32[2,16]{1,0:T(2,128)}', space=vmem, size = 0x400, scoped, tag = 'scratch operand']
  %s0 = inlined_call_operand.vmem [shape: bf16[128,7], index: 0, kind: input, shape index: {}]
  %s1 = inlined_call_operand.vmem [shape: f32[2,7], index: 1, kind: input, shape index: {}]
  %s2 = inlined_call_operand.vmem [shape: bf16[7,16], index: 2, kind: input, shape index: {}]
  %s3 = inlined_call_operand.vmem [shape: bf16[128,16], index: 3, kind: output, shape index: {0}]
  %s4 = inlined_call_operand.hbm [shape: f32[2,16], index: 4, kind: output, shape index: {1}]
  %5 = xla_tuple %s3, %s4
  %s6 = sld [smem:[#allocation0]]
  $region38: #{tpu_custom_call.1} parent=0
    _
  %s8 = ssub.s32 1, %s6
  %s9 = scalar_select 0, %s8, %s6
  $region1: #{tpu_custom_call.1} parent=0
    #allocation3 [shape = 'u8[1024]{0}', space=vmem, size = 0x400, scoped, tag = 'output window, operand 1, single buffered']
    #allocation4 [shape = 's32[1]{0}', space=sflag, size = 0x4, scoped, tag = 'scoped memory for tpu_custom_call.1']
    %10 = vsyncpa [#allocation4], 0
    // Predicated region
    $region2: #{tpu_custom_call.1} parent=1 // pred_check
      _
    $region3: #{tpu_custom_call.1} parent=1 // pred_check_branch
      %12 = sbr.rel (0) target = $region5
    $region4: #{tpu_custom_call.1} parent=1 // pred_region
      _
    $region5: #{tpu_custom_call.1} parent=1 // pred_fallthru
      _
    // Predicated region
    $region6: #{tpu_custom_call.1} parent=1 // pred_check
      _
    $region7: #{tpu_custom_call.1} parent=1 // pred_check_branch
      %14 = sbr.rel (0) target = $region9
    $region8: #{tpu_custom_call.1} parent=1 // pred_region
      _
    $region9: #{tpu_custom_call.1} parent=1 // pred_fallthru
      _
    // Predicated region
    $region10: #{tpu_custom_call.1} parent=1 // pred_check
      _
    $region11: #{tpu_custom_call.1} parent=1 // pred_check_branch
      %16 = sbr.rel (0) target = $region13
    $region12: #{tpu_custom_call.1} parent=1 // pred_region
      _
    $region13: #{tpu_custom_call.1} parent=1 // pred_fallthru
      _
    %p18 = scmp.eq.s32.totalorder 0, 0
    // Predicated region
    $region14: #{tpu_custom_call.1} parent=1 // pred_check
      %p19 = pneg %p18
    $region15: #{tpu_custom_call.1} parent=1 // pred_check_branch
      %21 = sbr.rel (%p19) target = $region17
    $region16: #{tpu_custom_call.1} parent=1 // pred_region
      %vm22 = vcmask 123904
      %23 = vst.msk [vmem:[#allocation2] sm:$0x3] %vm22, 0.0
    $region17: #{tpu_custom_call.1} parent=1 // pred_fallthru
      _
    %v24 = vld [vmem:[%s0] sm:$0xf]
    %v25 = vld [vmem:[%s0 + $0x4] sm:$0xf]
    %v26 = vld [vmem:[%s0 + $0x8] sm:$0xf]
    %v27 = vld [vmem:[%s0 + $0xc] sm:$0xf]
    %v28 = vld [vmem:[%s0 + $0x10] sm:$0xf]
    %v29 = vld [vmem:[%s0 + $0x14] sm:$0xf]
    %v30 = vld [vmem:[%s0 + $0x18] sm:$0xf]
    %v31 = vld [vmem:[%s0 + $0x1c] sm:$0xf]
    %v32 = vld [vmem:[%s0 + $0x20] sm:$0xf]
    %v33 = vld [vmem:[%s0 + $0x24] sm:$0xf]
    %v34 = vld [vmem:[%s0 + $0x28] sm:$0xf]
    %v35 = vld [vmem:[%s0 + $0x2c] sm:$0xf]
    %v36 = vld [vmem:[%s0 + $0x30] sm:$0xf]
    %v37 = vld [vmem:[%s0 + $0x34] sm:$0xf]
    %v38 = vld [vmem:[%s0 + $0x38] sm:$0xf]
    %v39 = vld [vmem:[%s0 + $0x3c] sm:$0xf]
    %v40 = vld [vmem:[%s2] sm:$0xf]
    %v57 = vunpack.c.l.b16 %v24
    %v58 = vunpack.c.l.b16 %v25
    %v59 = vunpack.c.l.b16 %v26
    %v60 = vunpack.c.l.b16 %v27
    %v61 = vunpack.c.l.b16 %v28
    %v62 = vunpack.c.l.b16 %v29
    %v63 = vunpack.c.l.b16 %v30
    %v64 = vunpack.c.l.b16 %v31
    %v65 = vunpack.c.l.b16 %v32
    %v66 = vunpack.c.l.b16 %v33
    %v67 = vunpack.c.l.b16 %v34
    %v68 = vunpack.c.l.b16 %v35
    %v69 = vunpack.c.l.b16 %v36
    %v70 = vunpack.c.l.b16 %v37
    %v71 = vunpack.c.l.b16 %v38
    %v72 = vunpack.c.l.b16 %v39
    %v73 = vpack.c.b16 %v58, %v57
    %v74 = vpack.c.b16 %v60, %v59
    %v75 = vpack.c.b16 %v62, %v61
    %v76 = vpack.c.b16 %v64, %v63
    %v77 = vpack.c.b16 %v66, %v65
    %v78 = vpack.c.b16 %v68, %v67
    %v79 = vpack.c.b16 %v70, %v69
    %v80 = vpack.c.b16 %v72, %v71
    %vm81 = vcmask 56320
    %v83 = vsel %vm81, %v73, 0
    %v86 = vsel %vm81, %v74, 0
    %v89 = vsel %vm81, %v75, 0
    %v92 = vsel %vm81, %v76, 0
    %v95 = vsel %vm81, %v77, 0
    %v98 = vsel %vm81, %v78, 0
    %v101 = vsel %vm81, %v79, 0
    %v104 = vsel %vm81, %v80, 0
    %vm106 = vcmask 1042432
    %vm107 = vcmask 1043456
    %v108 = vsel %vm106, 4294967295, 65535
    %v109 = vsel %vm107, %v108, 0
    %v111 = vand.u32 %v40, %v109
    %113 = vmatprep.subr.bf16.mxu0 0
    %114 = vmatpush1.bf16.msra.mxu0 %v111
    %115 = vmatprep.subr.bf16.mxu0 0
    %116 = vmatpush1.bf16.msra.mxu0 0
    %117 = vmatprep.subr.bf16.mxu0 0
    %118 = vmatpush1.bf16.msra.mxu0 0
    %119 = vmatprep.subr.bf16.mxu0 0
    %120 = vmatpush1.bf16.msra.mxu0 0
    %121 = vmatprep.subr.bf16.mxu0 0
    %122 = vmatpush1.bf16.msra.mxu0 0
    %123 = vmatprep.subr.bf16.mxu0 0
    %124 = vmatpush1.bf16.msra.mxu0 0
    %125 = vmatprep.subr.bf16.mxu0 0
    %126 = vmatpush1.bf16.msra.mxu0 0
    %127 = vmatprep.subr.bf16.mxu0 0
    %128 = vmatpush1.bf16.msra.mxu0 0
    %129 = vmatprep.subr.bf16.mxu0 0
    %130 = vmatpush1.bf16.msra.mxu0 0
    %131 = vmatprep.subr.bf16.mxu0 0
    %132 = vmatpush1.bf16.msra.mxu0 0
    %133 = vmatprep.subr.bf16.mxu0 0
    %134 = vmatpush1.bf16.msra.mxu0 0
    %135 = vmatprep.subr.bf16.mxu0 0
    %136 = vmatpush1.bf16.msra.mxu0 0
    %137 = vmatprep.subr.bf16.mxu0 0
    %138 = vmatpush1.bf16.msra.mxu0 0
    %139 = vmatprep.subr.bf16.mxu0 0
    %140 = vmatpush1.bf16.msra.mxu0 0
    %141 = vmatprep.subr.bf16.mxu0 0
    %142 = vmatpush1.bf16.msra.mxu0 0
    %143 = vmatprep.subr.bf16.mxu0 0
    %144 = vmatpush1.bf16.msra.mxu0 0
    %145 = vmatprep.mubr.bf16.mxu0 0
    %146 = vmatmul.mubr.bf16.gmra.mrb[0].mxu0 %v83
    %v147 = vpop.f32.mrb[0].mxu0
    %v148 = vadd.f32 0.0, %v147
    %v149 = vpop.f32.mrb[0].mxu0
    %v150 = vpop.f32.mrb[0].mxu0
    %v151 = vadd.f32 0.0, %v150
    %v152 = vpop.f32.mrb[0].mxu0
    %153 = vmatprep.mubr.bf16.mxu0 0
    %154 = vmatmul.mubr.bf16.gmra.mrb[0].mxu0 %v86
    %v155 = vpop.f32.mrb[0].mxu0
    %v156 = vadd.f32 0.0, %v155
    %v157 = vpop.f32.mrb[0].mxu0
    %v158 = vpop.f32.mrb[0].mxu0
    %v159 = vadd.f32 0.0, %v158
    %v160 = vpop.f32.mrb[0].mxu0
    %161 = vmatprep.mubr.bf16.mxu0 0
    %162 = vmatmul.mubr.bf16.gmra.mrb[0].mxu0 %v89
    %v163 = vpop.f32.mrb[0].mxu0
    %v164 = vadd.f32 0.0, %v163
    %v165 = vpop.f32.mrb[0].mxu0
    %v166 = vpop.f32.mrb[0].mxu0
    %v167 = vadd.f32 0.0, %v166
    %v168 = vpop.f32.mrb[0].mxu0
    %169 = vmatprep.mubr.bf16.mxu0 0
    %170 = vmatmul.mubr.bf16.gmra.mrb[0].mxu0 %v92
    %v171 = vpop.f32.mrb[0].mxu0
    %v172 = vadd.f32 0.0, %v171
    %v173 = vpop.f32.mrb[0].mxu0
    %v174 = vpop.f32.mrb[0].mxu0
    %v175 = vadd.f32 0.0, %v174
    %v176 = vpop.f32.mrb[0].mxu0
    %177 = vmatprep.mubr.bf16.mxu0 0
    %178 = vmatmul.mubr.bf16.gmra.mrb[0].mxu0 %v95
    %v179 = vpop.f32.mrb[0].mxu0
    %v180 = vadd.f32 0.0, %v179
    %v181 = vpop.f32.mrb[0].mxu0
    %v182 = vpop.f32.mrb[0].mxu0
    %v183 = vadd.f32 0.0, %v182
    %v184 = vpop.f32.mrb[0].mxu0
    %185 = vmatprep.mubr.bf16.mxu0 0
    %186 = vmatmul.mubr.bf16.gmra.mrb[0].mxu0 %v98
    %v187 = vpop.f32.mrb[0].mxu0
    %v188 = vadd.f32 0.0, %v187
    %v189 = vpop.f32.mrb[0].mxu0
    %v190 = vpop.f32.mrb[0].mxu0
    %v191 = vadd.f32 0.0, %v190
    %v192 = vpop.f32.mrb[0].mxu0
    %193 = vmatprep.mubr.bf16.mxu0 0
    %194 = vmatmul.mubr.bf16.gmra.mrb[0].mxu0 %v101
    %v195 = vpop.f32.mrb[0].mxu0
    %v196 = vadd.f32 0.0, %v195
    %v197 = vpop.f32.mrb[0].mxu0
    %v198 = vpop.f32.mrb[0].mxu0
    %v199 = vadd.f32 0.0, %v198
    %v200 = vpop.f32.mrb[0].mxu0
    %201 = vmatprep.mubr.bf16.mxu0 0
    %202 = vmatmul.mubr.bf16.gmra.mrb[0].mxu0 %v104
    %v203 = vpop.f32.mrb[0].mxu0
    %v204 = vadd.f32 0.0, %v203
    %v205 = vpop.f32.mrb[0].mxu0
    %v206 = vpop.f32.mrb[0].mxu0
    %v207 = vadd.f32 0.0, %v206
    %v208 = vpop.f32.mrb[0].mxu0
    %209 = vdwg.mxu0
    %v210 = vpack.c.bf16 %v151, %v148
    %v211 = vpack.c.bf16 %v159, %v156
    %v212 = vpack.c.bf16 %v167, %v164
    %v213 = vpack.c.bf16 %v175, %v172
    %v214 = vpack.c.bf16 %v183, %v180
    %v215 = vpack.c.bf16 %v191, %v188
    %v216 = vpack.c.bf16 %v199, %v196
    %v217 = vpack.c.bf16 %v207, %v204
    %v226 = vunpack.c.l.b16 %v210
    %v227 = vunpack.c.h.b16 %v210
    %v228 = vunpack.c.l.b16 %v211
    %v229 = vunpack.c.h.b16 %v211
    %v230 = vunpack.c.l.b16 %v212
    %v231 = vunpack.c.h.b16 %v212
    %v232 = vunpack.c.l.b16 %v213
    %v233 = vunpack.c.h.b16 %v213
    %v234 = vunpack.c.l.b16 %v214
    %v235 = vunpack.c.h.b16 %v214
    %v236 = vunpack.c.l.b16 %v215
    %v237 = vunpack.c.h.b16 %v215
    %v238 = vunpack.c.l.b16 %v216
    %v239 = vunpack.c.h.b16 %v216
    %v240 = vunpack.c.l.b16 %v217
    %v241 = vunpack.c.h.b16 %v217
    %v242 = vpack.c.b16 %v226, %v226
    %v243 = vpack.c.b16 %v227, %v227
    %v244 = vpack.c.b16 %v228, %v228
    %v245 = vpack.c.b16 %v229, %v229
    %v246 = vpack.c.b16 %v230, %v230
    %v247 = vpack.c.b16 %v231, %v231
    %v248 = vpack.c.b16 %v232, %v232
    %v249 = vpack.c.b16 %v233, %v233
    %v250 = vpack.c.b16 %v234, %v234
    %v251 = vpack.c.b16 %v235, %v235
    %v252 = vpack.c.b16 %v236, %v236
    %v253 = vpack.c.b16 %v237, %v237
    %v254 = vpack.c.b16 %v238, %v238
    %v255 = vpack.c.b16 %v239, %v239
    %v256 = vpack.c.b16 %v240, %v240
    %v257 = vpack.c.b16 %v241, %v241
    %vm274 = vcmask 125952
    %275 = vst.msk [vmem:[%s3] sm:$0xf] %vm274, %v242
    %276 = vst.msk [vmem:[%s3 + $0x4] sm:$0xf] %vm274, %v243
    %277 = vst.msk [vmem:[%s3 + $0x8] sm:$0xf] %vm274, %v244
    %278 = vst.msk [vmem:[%s3 + $0xc] sm:$0xf] %vm274, %v245
    %279 = vst.msk [vmem:[%s3 + $0x10] sm:$0xf] %vm274, %v246
    %280 = vst.msk [vmem:[%s3 + $0x14] sm:$0xf] %vm274, %v247
    %281 = vst.msk [vmem:[%s3 + $0x18] sm:$0xf] %vm274, %v248
    %282 = vst.msk [vmem:[%s3 + $0x1c] sm:$0xf] %vm274, %v249
    %283 = vst.msk [vmem:[%s3 + $0x20] sm:$0xf] %vm274, %v250
    %284 = vst.msk [vmem:[%s3 + $0x24] sm:$0xf] %vm274, %v251
    %285 = vst.msk [vmem:[%s3 + $0x28] sm:$0xf] %vm274, %v252
    %286 = vst.msk [vmem:[%s3 + $0x2c] sm:$0xf] %vm274, %v253
    %287 = vst.msk [vmem:[%s3 + $0x30] sm:$0xf] %vm274, %v254
    %288 = vst.msk [vmem:[%s3 + $0x34] sm:$0xf] %vm274, %v255
    %289 = vst.msk [vmem:[%s3 + $0x38] sm:$0xf] %vm274, %v256
    %290 = vst.msk [vmem:[%s3 + $0x3c] sm:$0xf] %vm274, %v257
    %v291 = vld [vmem:[#allocation2] sm:$0x3]
    %vm292 = vcmask 130048
    %v293 = vsel %vm292, %v148, 0.0
    %v294 = vsel %vm292, %v151, 0.0
    %v295 = vadd.f32 %v293, %v294
    %v296 = vsel %vm292, %v156, 0.0
    %v297 = vadd.f32 %v295, %v296
    %v298 = vsel %vm292, %v159, 0.0
    %v299 = vadd.f32 %v297, %v298
    %v300 = vsel %vm292, %v164, 0.0
    %v301 = vadd.f32 %v299, %v300
    %v302 = vsel %vm292, %v167, 0.0
    %v303 = vadd.f32 %v301, %v302
    %v304 = vsel %vm292, %v172, 0.0
    %v305 = vadd.f32 %v303, %v304
    %v306 = vsel %vm292, %v175, 0.0
    %v307 = vadd.f32 %v305, %v306
    %v308 = vsel %vm292, %v180, 0.0
    %v309 = vadd.f32 %v307, %v308
    %v310 = vsel %vm292, %v183, 0.0
    %v311 = vadd.f32 %v309, %v310
    %v312 = vsel %vm292, %v188, 0.0
    %v313 = vadd.f32 %v311, %v312
    %v314 = vsel %vm292, %v191, 0.0
    %v315 = vadd.f32 %v313, %v314
    %v316 = vsel %vm292, %v196, 0.0
    %v317 = vadd.f32 %v315, %v316
    %v318 = vsel %vm292, %v199, 0.0
    %v319 = vadd.f32 %v317, %v318
    %v320 = vsel %vm292, %v204, 0.0
    %v321 = vadd.f32 %v319, %v320
    %v322 = vsel %vm292, %v207, 0.0
    %v323 = vadd.f32 %v321, %v322
    %v324 = vrot.slane %v323, 4
    %v325 = vadd.f32 %v323, %v324
    %v326 = vrot.slane %v325, 2
    %v327 = vadd.f32 %v325, %v326
    %v328 = vrot.slane %v327, 1
    %v329 = vadd.f32 %v327, %v328
    %v330 = vmul.f32 %v148, %v148
    %v331 = vmul.f32 %v151, %v151
    %v332 = vmul.f32 %v156, %v156
    %v333 = vmul.f32 %v159, %v159
    %v334 = vmul.f32 %v164, %v164
    %v335 = vmul.f32 %v167, %v167
    %v336 = vmul.f32 %v172, %v172
    %v337 = vmul.f32 %v175, %v175
    %v338 = vmul.f32 %v180, %v180
    %v339 = vmul.f32 %v183, %v183
    %v340 = vmul.f32 %v188, %v188
    %v341 = vmul.f32 %v191, %v191
    %v342 = vmul.f32 %v196, %v196
    %v343 = vmul.f32 %v199, %v199
    %v344 = vmul.f32 %v204, %v204
    %v345 = vmul.f32 %v207, %v207
    %v346 = vsel %vm292, %v330, 0.0
    %v347 = vsel %vm292, %v331, 0.0
    %v348 = vadd.f32 %v346, %v347
    %v349 = vsel %vm292, %v332, 0.0
    %v350 = vadd.f32 %v348, %v349
    %v351 = vsel %vm292, %v333, 0.0
    %v352 = vadd.f32 %v350, %v351
    %v353 = vsel %vm292, %v334, 0.0
    %v354 = vadd.f32 %v352, %v353
    %v355 = vsel %vm292, %v335, 0.0
    %v356 = vadd.f32 %v354, %v355
    %v357 = vsel %vm292, %v336, 0.0
    %v358 = vadd.f32 %v356, %v357
    %v359 = vsel %vm292, %v337, 0.0
    %v360 = vadd.f32 %v358, %v359
    %v361 = vsel %vm292, %v338, 0.0
    %v362 = vadd.f32 %v360, %v361
    %v363 = vsel %vm292, %v339, 0.0
    %v364 = vadd.f32 %v362, %v363
    %v365 = vsel %vm292, %v340, 0.0
    %v366 = vadd.f32 %v364, %v365
    %v367 = vsel %vm292, %v341, 0.0
    %v368 = vadd.f32 %v366, %v367
    %v369 = vsel %vm292, %v342, 0.0
    %v370 = vadd.f32 %v368, %v369
    %v371 = vsel %vm292, %v343, 0.0
    %v372 = vadd.f32 %v370, %v371
    %v373 = vsel %vm292, %v344, 0.0
    %v374 = vadd.f32 %v372, %v373
    %v375 = vsel %vm292, %v345, 0.0
    %v376 = vadd.f32 %v374, %v375
    %v377 = vrot.slane %v376, 4
    %v378 = vadd.f32 %v376, %v377
    %v379 = vrot.slane %v378, 2
    %v380 = vadd.f32 %v378, %v379
    %v381 = vrot.slane %v380, 1
    %v382 = vadd.f32 %v380, %v381
    %vm383 = vcmask 1040384
    %v384 = vsel %vm383, %v329, %v382
    %v385 = vadd.f32 %v291, %v384
    %vm386 = vcmask 123904
    %387 = vst.msk [vmem:[#allocation2] sm:$0x3] %vm386, %v385
    // Predicated region
    $region18: #{tpu_custom_call.1} parent=1 // pred_check
      %p388 = pneg %p18
    $region19: #{tpu_custom_call.1} parent=1 // pred_check_branch
      %390 = sbr.rel (%p388) target = $region21
    $region20: #{tpu_custom_call.1} parent=1 // pred_region
      %v391 = vld [vmem:[#allocation2] sm:$0x3]
      %392 = vst.msk [vmem:[#allocation3] sm:$0x3] %vm386, %v391
    $region21: #{tpu_custom_call.1} parent=1 // pred_fallthru
      _
    // Predicated region
    $region22: #{tpu_custom_call.1} parent=1 // pred_check
      _
    $region23: #{tpu_custom_call.1} parent=1 // pred_check_branch
      %394 = sbr.rel (0) target = $region25
    $region24: #{tpu_custom_call.1} parent=1 // pred_region
      _
    $region25: #{tpu_custom_call.1} parent=1 // pred_fallthru
      _
    // Predicated region
    $region26: #{tpu_custom_call.1} parent=1 // pred_check
      _
    $region27: #{tpu_custom_call.1} parent=1 // pred_check_branch
      %396 = sbr.rel (0) target = $region29
    $region28: #{tpu_custom_call.1} parent=1 // pred_region
      %s398 = ssub.s32 32, 32
      %399 = vsyncadd [#allocation4], %s398
      %s401 = sshll.u32 [#allocation3], 4
      %s402 = int_to_ptr.vmem [resolvable:$true] %s401
      %404 = dma.vmem_to_hbm [thread:$0]  %s402, 32, %s4, [#allocation4]
    $region29: #{tpu_custom_call.1} parent=1 // pred_fallthru
      _
    // Predicated region
    $region30: #{tpu_custom_call.1} parent=1 // pred_check
      _
    $region31: #{tpu_custom_call.1} parent=1 // pred_check_branch
      %406 = sbr.rel (0) target = $region33
    $region32: #{tpu_custom_call.1} parent=1 // pred_region
      _
    $region33: #{tpu_custom_call.1} parent=1 // pred_fallthru
      _
    // Predicated region
    $region34: #{tpu_custom_call.1} parent=1 // pred_check
      _
    $region35: #{tpu_custom_call.1} parent=1 // pred_check_branch
      %408 = sbr.rel (0) target = $region37
    $region36: #{tpu_custom_call.1} parent=1 // pred_region
      %409 = dma.done [#allocation4], 32
    $region37: #{tpu_custom_call.1} parent=1 // pred_fallthru
      _
    %410 = vsyncpa [#allocation4], 1

</llo_original>
